<compile_context>
chip_gen: v7x
topology: tpu7x:2x2x1
jax: 0.10.0
libtpu: 0.0.40
codegen_flags: <defaults>
</compile_context>

<pallas_src>
import functools

import jax
import jax.numpy as jnp
from jax.experimental import pallas as pl
from jax.experimental.pallas import tpu as pltpu


def _round_up(x, m):
    return (x + m - 1) // m * m


# ---------------------------------------------------------------------------
# Fused GCN kernel:  acc[i] += adj[i, k] @ (x[k] @ W);  epilogue adds bias.
# ---------------------------------------------------------------------------

def _gcn_kernel(x_ref, adj_ref, w_ref, b_ref, o_ref, acc_ref, *rest,
                adj_batched, cache_support, add_bias):
    i = pl.program_id(1)
    k = pl.program_id(2)

    @pl.when(k == 0)
    def _():
        acc_ref[...] = jnp.zeros_like(acc_ref)

    if cache_support:
        sup_ref = rest[0]

        # Fill the support cache for this (batch, k-tile) on the first row tile;
        # every later row tile of the same batch element reuses it.
        @pl.when(i == 0)
        def _():
            s = jnp.dot(x_ref[0], w_ref[...],
                        preferred_element_type=jnp.float32)
            sup_ref[k] = s.astype(sup_ref.dtype)

        s_tile = sup_ref[k]
    else:
        s = jnp.dot(x_ref[0], w_ref[...], preferred_element_type=jnp.float32)
        s_tile = s.astype(x_ref.dtype)

    adj_tile = adj_ref[0] if adj_batched else adj_ref[...]
    acc_ref[...] += jnp.dot(adj_tile, s_tile,
                            preferred_element_type=jnp.float32)

    @pl.when(k == pl.num_programs(2) - 1)
    def _():
        res = acc_ref[...]
        if add_bias:
            res = res + b_ref[...]
        o_ref[0] = res.astype(o_ref.dtype)


def graph_convolution(x, adj, weight, bias=None, *,
                      compute_dtype=jnp.bfloat16,
                      max_node_tile=512,
                      support_cache_budget_bytes=8 * 1024 * 1024):
    """Fused GCN layer: adj @ (x @ weight) (+ bias).

    x:      (B, N, F_in) or (N, F_in)
    adj:    (B, N, N) per-example, or (N, N) shared across the batch
    weight: (F_in, F_out)
    bias:   None, (F_out,) or (1, 1, F_out)   (matches the PyTorch module)

    compute_dtype=jnp.float32 recovers full-precision PyTorch numerics;
    the default bf16 keeps accumulation in f32.
    """
    squeeze = x.ndim == 2
    if squeeze:
        x = x[None]
    B, N, F_in = x.shape
    F_out = weight.shape[1]
    adj_batched = adj.ndim == 3
    out_dtype = x.dtype
    itemsize_c = jnp.dtype(compute_dtype).itemsize

    # ---- tile selection / minimal padding ---------------------------------
    # Small graphs: one full-extent block (exempt from the (8,128) rule),
    # zero padding.  Larger graphs: pad N to the nearest multiple of 128 and
    # pick the largest tile in {512, 256, 128} that divides the padded size.
    if N <= 256:
        Np = N
        tile = N
    else:
        Np = _round_up(N, 128)
        tile = 128
        for t in (512, 256):
            if t <= max_node_tile and Np % t == 0:
                tile = t
                break
    tm = tk = tile
    It = Np // tm
    Kt = Np // tk

    xc = x.astype(compute_dtype)
    ac = adj.astype(compute_dtype)
    wc = weight.astype(compute_dtype)
    if Np != N:
        pad = Np - N
        xc = jnp.pad(xc, ((0, 0), (0, pad), (0, 0)))
        if adj_batched:
            ac = jnp.pad(ac, ((0, 0), (0, pad), (0, pad)))
        else:
            ac = jnp.pad(ac, ((0, pad), (0, pad)))

    add_bias = bias is not None
    if add_bias:
        b2 = jnp.asarray(bias, jnp.float32).reshape(1, F_out)
    else:
        b2 = jnp.zeros((1, F_out), jnp.float32)  # tiny, resident, never added

    # ---- support cache (only pays off with multiple output-row tiles) -----
    cache_bytes = Kt * tk * F_out * itemsize_c
    cache_support = (It > 1) and (cache_bytes <= support_cache_budget_bytes)

    scratch_shapes = [pltpu.VMEM((tm, F_out), jnp.float32)]
    if cache_support:
        scratch_shapes.append(pltpu.VMEM((Kt, tk, F_out), compute_dtype))

    if adj_batched:
        adj_spec = pl.BlockSpec((1, tm, tk), lambda b, i, k: (b, i, k))
    else:  # shared adjacency: broadcast over the batch via the index_map
        adj_spec = pl.BlockSpec((tm, tk), lambda b, i, k: (i, k))

    # With the support cache the row-tile axis must stay on one core (the
    # cache is filled at i == 0), so only the batch axis is megacore-parallel.
    if cache_support:
        dims = ("parallel", "arbitrary", "arbitrary")
    else:
        dims = ("parallel", "parallel", "arbitrary")

    flops = 2 * B * (Np * F_in * F_out + Np * Np * F_out)
    bytes_accessed = (xc.size * xc.dtype.itemsize
                      + ac.size * ac.dtype.itemsize
                      + wc.size * wc.dtype.itemsize
                      + B * Np * F_out * jnp.dtype(out_dtype).itemsize)

    # Rough double-buffered VMEM footprint (inputs + output + scratch).
    vmem_est = 2 * itemsize_c * (tk * F_in + tm * tk + F_in * F_out + F_out)
    vmem_est += 2 * tm * F_out * jnp.dtype(out_dtype).itemsize
    vmem_est += tm * F_out * 4
    if cache_support:
        vmem_est += cache_bytes
    vmem_limit = min(64 * 1024 * 1024, max(32 * 1024 * 1024, int(1.5 * vmem_est)))

    out = pl.pallas_call(
        functools.partial(_gcn_kernel, adj_batched=adj_batched,
                          cache_support=cache_support, add_bias=add_bias),
        out_shape=jax.ShapeDtypeStruct((B, Np, F_out), out_dtype),
        grid_spec=pltpu.PrefetchScalarGridSpec(
            num_scalar_prefetch=0,
            grid=(B, It, Kt),
            in_specs=[
                pl.BlockSpec((1, tk, F_in), lambda b, i, k: (b, k, 0)),  # x
                adj_spec,                                                # adj
                pl.BlockSpec((F_in, F_out), lambda b, i, k: (0, 0)),     # W (resident)
                pl.BlockSpec((1, F_out), lambda b, i, k: (0, 0)),        # bias
            ],
            out_specs=pl.BlockSpec((1, tm, F_out), lambda b, i, k: (b, i, 0)),
            scratch_shapes=scratch_shapes,
        ),
        compiler_params=pltpu.CompilerParams(
            dimension_semantics=dims, vmem_limit_bytes=vmem_limit),
        cost_estimate=pl.CostEstimate(flops=flops, transcendentals=0,
                                      bytes_accessed=bytes_accessed),
    )(xc, ac, wc, b2)

    out = out[:, :N, :]
    return out[0] if squeeze else out


# ---------------------------------------------------------------------------
# Pure-JAX reference (same bf16 cast points as the kernel) and test harness
# ---------------------------------------------------------------------------

def gcn_reference(x, adj, weight, bias, compute_dtype=jnp.bfloat16):
    xc = x.astype(compute_dtype)
    wc = weight.astype(compute_dtype)
    support = jnp.einsum("bnf,fo->bno", xc, wc,
                         preferred_element_type=jnp.float32)
    sc = support.astype(compute_dtype)
    if adj.ndim == 3:
        out = jnp.einsum("bnm,bmo->bno", adj.astype(compute_dtype), sc,
                         preferred_element_type=jnp.float32)
    else:
        out = jnp.einsum("nm,bmo->bno", adj.astype(compute_dtype), sc,
                         preferred_element_type=jnp.float32)
    if bias is not None:
        out = out + jnp.asarray(bias, jnp.float32).reshape(1, 1, -1)
    return out


def _init_gcn_params(key, in_features, out_features, with_bias):
    # Mirrors GraphConvolution.reset_parameters: U(-stdv, stdv), stdv=1/sqrt(out).
    stdv = 1.0 / (out_features ** 0.5)
    wkey, bkey = jax.random.split(key)
    weight = jax.random.uniform(wkey, (in_features, out_features),
                                jnp.float32, -stdv, stdv)
    bias = (jax.random.uniform(bkey, (1, 1, out_features), jnp.float32,
                               -stdv, stdv) if with_bias else None)
    return weight, bias


def _normalized_adj(key, b, n):
    # Random symmetric adjacency + self loops, row-normalized (typical GCN input).
    a = (jax.random.uniform(key, (b, n, n)) < 0.3).astype(jnp.float32)
    a = jnp.maximum(a, jnp.transpose(a, (0, 2, 1)))
    a = a + jnp.eye(n, dtype=jnp.float32)[None]
    deg = jnp.sum(a, axis=-1, keepdims=True)
    return a / deg


if __name__ == "__main__":
    key = jax.random.PRNGKey(0)
    k_x, k_a, k_p, k_x3, k_a2, k_p2 = jax.random.split(key, 6)

    # Case 1: batched adjacency, bias=False (the module's default), small graph.
    B, N, F_in, F_out = 2, 16, 32, 64
    x = jax.random.normal(k_x, (B, N, F_in), jnp.float32)
    adj = _normalized_adj(k_a, B, N)
    w, _ = _init_gcn_params(k_p, F_in, F_out, with_bias=False)
    out = jax.block_until_ready(graph_convolution(x, adj, w, None))
    ref = gcn_reference(x, adj, w, None)
    assert out.shape == (B, N, F_out)
    assert bool(jnp.all(jnp.isfinite(out)))
    assert bool(jnp.allclose(out, ref, rtol=1e-2, atol=1e-3))

    # Case 2: adjacency shared across the batch + bias=True path.
    w2, b2 = _init_gcn_params(k_p2, F_in, F_out, with_bias=True)
    adj_shared = _normalized_adj(k_a2, 1, N)[0]
    out2 = jax.block_until_ready(graph_convolution(x, adj_shared, w2, b2))
    ref2 = gcn_reference(x, adj_shared, w2, b2)
    assert out2.shape == (B, N, F_out)
    assert bool(jnp.all(jnp.isfinite(out2)))
    assert bool(jnp.allclose(out2, ref2, rtol=1e-2, atol=1e-3))

    # Case 3: node count above 256 -> exercises padded/tiled path with the
    # VMEM support cache (N=320 -> Np=384, tile=128, 3x3 node tiles).
    B3, N3, F_in3, F_out3 = 2, 320, 48, 96
    x3 = jax.random.normal(k_x3, (B3, N3, F_in3), jnp.float32)
    adj3 = _normalized_adj(k_a, B3, N3)
    w3, b3 = _init_gcn_params(k_p, F_in3, F_out3, with_bias=True)
    out3 = jax.block_until_ready(graph_convolution(x3, adj3, w3, b3))
    ref3 = gcn_reference(x3, adj3, w3, b3)
    assert out3.shape == (B3, N3, F_out3)
    assert bool(jnp.all(jnp.isfinite(out3)))
    assert bool(jnp.allclose(out3, ref3, rtol=1e-2, atol=1e-3))

    print("KERNEL_OK")
</pallas_src>

<mosaic_0001>
module attributes {stable_mosaic.version = 11 : i64} {
  func.func @_gcn_kernel(%arg0: i32, %arg1: i32, %arg2: i32, %arg3: memref<1x16x32xbf16, #tpu.memory_space<vmem>>, %arg4: memref<1x16x16xbf16, #tpu.memory_space<vmem>>, %arg5: memref<32x64xbf16, #tpu.memory_space<vmem>>, %arg6: memref<1x64xf32, #tpu.memory_space<vmem>>, %arg7: memref<1x16x64xf32, #tpu.memory_space<vmem>>, %arg8: memref<16x64xf32, #tpu.memory_space<vmem>>) attributes {dimension_semantics = [#tpu.dimension_semantics<parallel>, #tpu.dimension_semantics<parallel>, #tpu.dimension_semantics<arbitrary>], iteration_bounds = array<i64: 2, 1, 1>, scalar_prefetch = 0 : i64, scratch_operands = 1 : i64, tpu.core_type = #tpu.core_type<tc>, window_params = [{transform_indices = @transform_0, window_bounds = array<i64: 1, 16, 32>}, {transform_indices = @transform_1, window_bounds = array<i64: 1, 16, 16>}, {pipeline_mode = #tpu.pipeline_mode<synchronous>, transform_indices = @transform_2, window_bounds = array<i64: 32, 64>}, {pipeline_mode = #tpu.pipeline_mode<synchronous>, transform_indices = @transform_3, window_bounds = array<i64: 1, 64>}, {transform_indices = @transform_4, window_bounds = array<i64: 1, 16, 64>}]} {
    %c0_i32 = arith.constant 0 : i32
    %0 = arith.cmpi eq, %arg2, %c0_i32 : i32
    %1 = arith.extui %0 : i1 to i32
    %c0_i32_0 = arith.constant 0 : i32
    %2 = arith.cmpi ne, %1, %c0_i32_0 : i32
    scf.if %2 {
      %cst_15 = arith.constant 0.000000e+00 : f32
      %17 = vector.broadcast %cst_15 : f32 to vector<16x64xf32>
      %c0_16 = arith.constant 0 : index
      %c0_17 = arith.constant 0 : index
      %18 = vector.load %arg8[%c0_16, %c0_17] : memref<16x64xf32, #tpu.memory_space<vmem>>, vector<16x64xf32>
      tpu.vector_store %arg8[%c0_16, %c0_17], %17 {strides = array<i32>} : memref<16x64xf32, #tpu.memory_space<vmem>>, vector<16x64xf32>,
    } else {
    }
    %c0 = arith.constant 0 : index
    %c0_1 = arith.constant 0 : index
    %c0_2 = arith.constant 0 : index
    %3 = vector.load %arg3[%c0, %c0_1, %c0_2] : memref<1x16x32xbf16, #tpu.memory_space<vmem>>, vector<1x16x32xbf16>
    %4 = vector.shape_cast %3 : vector<1x16x32xbf16> to vector<16x32xbf16>
    %c0_3 = arith.constant 0 : index
    %c0_4 = arith.constant 0 : index
    %5 = vector.load %arg5[%c0_3, %c0_4] : memref<32x64xbf16, #tpu.memory_space<vmem>>, vector<32x64xbf16>
    %cst = arith.constant dense<0.000000e+00> : vector<16x64xf32>
    %6 = tpu.matmul %4, %5, %cst {dimension_numbers = #tpu.dot_dimension_numbers<[1], [0], [0], [1], [0, 0, 1, 1], [], []>} : vector<16x32xbf16>, vector<32x64xbf16>, vector<16x64xf32> -> vector<16x64xf32>
    %7 = arith.truncf %6 : vector<16x64xf32> to vector<16x64xbf16>
    %c0_5 = arith.constant 0 : index
    %c0_6 = arith.constant 0 : index
    %c0_7 = arith.constant 0 : index
    %8 = vector.load %arg4[%c0_5, %c0_6, %c0_7] : memref<1x16x16xbf16, #tpu.memory_space<vmem>>, vector<1x16x16xbf16>
    %9 = vector.shape_cast %8 : vector<1x16x16xbf16> to vector<16x16xbf16>
    %c0_8 = arith.constant 0 : index
    %c0_9 = arith.constant 0 : index
    %10 = vector.load %arg8[%c0_8, %c0_9] : memref<16x64xf32, #tpu.memory_space<vmem>>, vector<16x64xf32>
    %cst_10 = arith.constant dense<0.000000e+00> : vector<16x64xf32>
    %11 = tpu.matmul %9, %7, %cst_10 {dimension_numbers = #tpu.dot_dimension_numbers<[1], [0], [0], [1], [0, 0, 1, 1], [], []>} : vector<16x16xbf16>, vector<16x64xbf16>, vector<16x64xf32> -> vector<16x64xf32>
    %12 = arith.addf %10, %11 : vector<16x64xf32>
    %c0_11 = arith.constant 0 : index
    %c0_12 = arith.constant 0 : index
    %13 = vector.load %arg8[%c0_11, %c0_12] : memref<16x64xf32, #tpu.memory_space<vmem>>, vector<16x64xf32>
    tpu.vector_store %arg8[%c0_11, %c0_12], %12 {strides = array<i32>} : memref<16x64xf32, #tpu.memory_space<vmem>>, vector<16x64xf32>,
    %c0_i32_13 = arith.constant 0 : i32
    %14 = arith.cmpi eq, %arg2, %c0_i32_13 : i32
    %15 = arith.extui %14 : i1 to i32
    %c0_i32_14 = arith.constant 0 : i32
    %16 = arith.cmpi ne, %15, %c0_i32_14 : i32
    scf.if %16 {
      %c0_15 = arith.constant 0 : index
      %c0_16 = arith.constant 0 : index
      %17 = vector.load %arg8[%c0_15, %c0_16] : memref<16x64xf32, #tpu.memory_space<vmem>>, vector<16x64xf32>
      %c0_17 = arith.constant 0 : index
      %c0_18 = arith.constant 0 : index
      %c0_19 = arith.constant 0 : index
      %18 = vector.load %arg7[%c0_17, %c0_18, %c0_19] : memref<1x16x64xf32, #tpu.memory_space<vmem>>, vector<1x16x64xf32>
      %19 = vector.shape_cast %18 : vector<1x16x64xf32> to vector<16x64xf32>
      %20 = vector.shape_cast %17 : vector<16x64xf32> to vector<1x16x64xf32>
      tpu.vector_store %arg7[%c0_17, %c0_18, %c0_19], %20 {strides = array<i32>} : memref<1x16x64xf32, #tpu.memory_space<vmem>>, vector<1x16x64xf32>,
    } else {
    }
    return
  }
  func.func @transform_0(%arg0: i32, %arg1: i32, %arg2: i32) -> (i32, i32, i32) {
    %c0_i32 = arith.constant 0 : i32
    %c0_i32_0 = arith.constant 0 : i32
    return %arg0, %arg2, %c0_i32 : i32, i32, i32
  }
  func.func @transform_1(%arg0: i32, %arg1: i32, %arg2: i32) -> (i32, i32, i32) {
    %c0_i32 = arith.constant 0 : i32
    return %arg0, %arg1, %arg2 : i32, i32, i32
  }
  func.func @transform_2(%arg0: i32, %arg1: i32, %arg2: i32) -> (i32, i32) {
    %c0_i32 = arith.constant 0 : i32
    %c0_i32_0 = arith.constant 0 : i32
    %c0_i32_1 = arith.constant 0 : i32
    return %c0_i32, %c0_i32_0 : i32, i32
  }
  func.func @transform_3(%arg0: i32, %arg1: i32, %arg2: i32) -> (i32, i32) {
    %c0_i32 = arith.constant 0 : i32
    %c0_i32_0 = arith.constant 0 : i32
    %c0_i32_1 = arith.constant 0 : i32
    return %c0_i32, %c0_i32_0 : i32, i32
  }
  func.func @transform_4(%arg0: i32, %arg1: i32, %arg2: i32) -> (i32, i32, i32) {
    %c0_i32 = arith.constant 0 : i32
    %c0_i32_0 = arith.constant 0 : i32
    return %arg0, %arg1, %c0_i32 : i32, i32, i32
  }
}

</mosaic_0001>

<llo_original>
// kernel: tpu_custom_call.1
$region0: #{tpu_custom_call.1}
  #allocation0 [shape = 'u32[]', space=smem, size = 0x4, offset = 0x4, fixed_abs, tag = 'smem constant byte address 0x4 - core index']
  #allocation1 [shape = 'u32[144,128]{1,0:T(1,128)}', space=vmem, size = 0x12000, scoped, tag = 'internal scratch']
  #allocation2 [shape = 'f32[16,64]{1,0:T(8,128)}', space=vmem, size = 0x2000, scoped, tag = 'scratch operand']
  %s0 = inlined_call_operand.hbm [shape: bf16[2,16,32], index: 0, kind: input, shape index: {}]
  %s1 = inlined_call_operand.hbm [shape: bf16[2,16,16], index: 1, kind: input, shape index: {}]
  %s2 = inlined_call_operand.hbm [shape: bf16[32,64], index: 2, kind: input, shape index: {}]
  %s3 = inlined_call_operand.vmem [shape: f32[1,64], index: 3, kind: input, shape index: {}]
  %s4 = inlined_call_operand.hbm [shape: f32[2,16,64], index: 4, kind: output, shape index: {}]
  %s5 = sld [smem:[#allocation0]]
  $region69: #{tpu_custom_call.1} parent=0
    _
  %s7 = ssub.s32 1, %s5
  %s8 = scalar_select 0, %s7, %s5
  $region1: #{tpu_custom_call.1} parent=0
    #allocation3 [shape = 'u8[8192]{0}', space=vmem, size = 0x2000, scoped, tag = 'input window, operand 0']
    #allocation4 [shape = 's32[2]{0}', space=sflag, size = 0x8, scoped, tag = 'scoped memory for tpu_custom_call.1']
    #allocation5 [shape = 's32[2]{0}', space=sflag, size = 0x8, scoped, tag = 'scoped memory for tpu_custom_call.1']
    #allocation6 [shape = 'u8[8192]{0}', space=vmem, size = 0x2000, scoped, tag = 'input window, operand 1']
    #allocation7 [shape = 's32[2]{0}', space=sflag, size = 0x8, scoped, tag = 'scoped memory for tpu_custom_call.1']
    #allocation8 [shape = 'u8[8192]{0}', space=vmem, size = 0x2000, scoped, tag = 'input window, operand 2, single buffered']
    #allocation9 [shape = 'u8[16384]{0}', space=vmem, size = 0x4000, scoped, tag = 'output window, operand 0']
    %9 = vsyncpa [#allocation4], 0
    %s10 = scalar_lea.sflag [#allocation4], 1
    %11 = vsyncpa %s10, 0
    %12 = vsyncpa [#allocation7], 0
    %s13 = scalar_lea.sflag [#allocation7], 1
    %14 = vsyncpa %s13, 0
    %15 = vsyncpa [#allocation5], 0
    %s16 = scalar_lea.sflag [#allocation5], 1
    %17 = vsyncpa %s16, 0
    loop: start=0, step=1, limit=4
    $region2: #{tpu_custom_call.1} parent=1 // loop_pre_header
      _
    $region3: #{tpu_custom_call.1} parent=1 // loop_header
      %s19 = sphi 0, %s23
      %p20 = scmp.ge.s32.totalorder %s19, 4
      %s26 = sphi 0, %s45
      %s27 = sphi 0, %s41
      %s28 = sphi 0, %s37
      %s29 = sphi 0, %s26
      %s30 = sphi 0, %s27
      %s31 = sphi 0, %s28
      %s32 = sphi 0, %s29
      %s33 = sphi 0, %s30
      %s34 = sphi 0, %s31
      %s50 = sphi 0, %s52
      %s53 = sphi 0, %s50
      %s54 = sphi 0, %s53
      %s70 = sphi 0, %s54
      %s80 = sphi 0, %s82
      %s83 = sphi 0, %s80
      %s84 = sphi 0, %s83
      %s100 = sphi 0, %s84
      %s104 = sphi 0, %s104
      %s106 = sphi 0, %s104
      %s107 = sphi 0, %s106
      %s121 = sphi 0, %s107
      %s125 = sphi 0, %s125
      %s127 = sphi 0, %s125
      %s128 = sphi 0, %s127
      %s142 = sphi 0, %s128
      %s150 = sphi 0, %s152
      %s153 = sphi 0, %s150
      %s154 = sphi 0, %s153
      %s170 = sphi 0, %s154
    $region4: #{tpu_custom_call.1} parent=1 // loop_header_branch
      %22 = sbr.rel (%p20) target = $region8
    $region5: #{tpu_custom_call.1} parent=1 // loop_body
      %s24 = ssub.s32 %s19, 1
      %s25 = ssub.s32 %s19, 2
      %s35 = sadd.s32 1, %s28
      %p36 = scmp.ge.s32.totalorder %s35, 1
      %s37 = scalar_select %p36, 0, %s35
      %s38 = sadd.s32 1, %s27
      %s39 = scalar_select %p36, %s38, %s27
      %p40 = scmp.ge.s32.totalorder %s39, 1
      %s41 = scalar_select %p40, 0, %s39
      %s42 = sadd.s32 1, %s26
      %s43 = scalar_select %p40, %s42, %s26
      %p44 = scmp.ge.s32.totalorder %s43, 2
      %s45 = scalar_select %p44, 0, %s43
      %s46 = ssub.s32 %s26, %s45
      %s47 = ssub.s32 %s28, %s37
      %s48 = sor.u32 %s46, %s47
      %p49 = scmp.eq.s32.totalorder %s48, 0
      %s51 = sadd.s32 %s50, 1
      %s52 = scalar_select %p49, %s50, %s51
      %p55 = pneg %p49
      %p56 = scmp.eq.s32.totalorder %s19, 1
      %p57 = por %p55, %p56
      %p58 = scmp.ne.s32.totalorder %s50, %s53
      %p59 = scmp.eq.s32.totalorder %s19, 0
      %p60 = por %p58, %p59
      %p61 = scmp.ne.s32.totalorder %s50, %s53
      %p62 = scmp.eq.s32.totalorder %s24, 1
      %p63 = por %p61, %p62
      %p64 = scmp.ne.s32.totalorder %s53, %s54
      %p65 = scmp.eq.s32.totalorder %s24, 0
      %p66 = por %p64, %p65
      %p67 = scmp.ne.s32.totalorder %s53, %s54
      %p68 = scmp.eq.s32.totalorder %s25, 1
      %p69 = por %p67, %p68
      %p71 = scmp.ne.s32.totalorder %s54, %s70
      %p72 = scmp.eq.s32.totalorder %s25, 0
      %p73 = por %p71, %p72
      %s74 = ssub.s32 %s26, %s45
      %s75 = ssub.s32 %s27, %s41
      %s76 = sor.u32 %s74, %s75
      %s77 = ssub.s32 %s28, %s37
      %s78 = sor.u32 %s76, %s77
      %p79 = scmp.eq.s32.totalorder %s78, 0
      %s81 = sadd.s32 %s80, 1
      %s82 = scalar_select %p79, %s80, %s81
      %p85 = pneg %p79
      %p86 = scmp.eq.s32.totalorder %s19, 1
      %p87 = por %p85, %p86
      %p88 = scmp.ne.s32.totalorder %s80, %s83
      %p89 = scmp.eq.s32.totalorder %s19, 0
      %p90 = por %p88, %p89
      %p91 = scmp.ne.s32.totalorder %s80, %s83
      %p92 = scmp.eq.s32.totalorder %s24, 1
      %p93 = por %p91, %p92
      %p94 = scmp.ne.s32.totalorder %s83, %s84
      %p95 = scmp.eq.s32.totalorder %s24, 0
      %p96 = por %p94, %p95
      %p97 = scmp.ne.s32.totalorder %s83, %s84
      %p98 = scmp.eq.s32.totalorder %s25, 1
      %p99 = por %p97, %p98
      %p101 = scmp.ne.s32.totalorder %s84, %s100
      %p102 = scmp.eq.s32.totalorder %s25, 0
      %p103 = por %p101, %p102
      %s105 = sadd.s32 %s104, 1
      %p108 = scmp.eq.s32.totalorder %s19, 1
      %p109 = scmp.ne.s32.totalorder %s104, %s106
      %p110 = scmp.eq.s32.totalorder %s19, 0
      %p111 = por %p109, %p110
      %p112 = scmp.ne.s32.totalorder %s104, %s106
      %p113 = scmp.eq.s32.totalorder %s24, 1
      %p114 = por %p112, %p113
      %p115 = scmp.ne.s32.totalorder %s106, %s107
      %p116 = scmp.eq.s32.totalorder %s24, 0
      %p117 = por %p115, %p116
      %p118 = scmp.ne.s32.totalorder %s106, %s107
      %p119 = scmp.eq.s32.totalorder %s25, 1
      %p120 = por %p118, %p119
      %p122 = scmp.ne.s32.totalorder %s107, %s121
      %p123 = scmp.eq.s32.totalorder %s25, 0
      %p124 = por %p122, %p123
      %s126 = sadd.s32 %s125, 1
      %p129 = scmp.eq.s32.totalorder %s19, 1
      %p130 = scmp.ne.s32.totalorder %s125, %s127
      %p131 = scmp.eq.s32.totalorder %s19, 0
      %p132 = por %p130, %p131
      %p133 = scmp.ne.s32.totalorder %s125, %s127
      %p134 = scmp.eq.s32.totalorder %s24, 1
      %p135 = por %p133, %p134
      %p136 = scmp.ne.s32.totalorder %s127, %s128
      %p137 = scmp.eq.s32.totalorder %s24, 0
      %p138 = por %p136, %p137
      %p139 = scmp.ne.s32.totalorder %s127, %s128
      %p140 = scmp.eq.s32.totalorder %s25, 1
      %p141 = por %p139, %p140
      %p143 = scmp.ne.s32.totalorder %s128, %s142
      %p144 = scmp.eq.s32.totalorder %s25, 0
      %p145 = por %p143, %p144
      %s146 = ssub.s32 %s26, %s45
      %s147 = ssub.s32 %s27, %s41
      %s148 = sor.u32 %s146, %s147
      %p149 = scmp.eq.s32.totalorder %s148, 0
      %s151 = sadd.s32 %s150, 1
      %s152 = scalar_select %p149, %s150, %s151
      %p155 = pneg %p149
      %p156 = scmp.eq.s32.totalorder %s19, 1
      %p157 = por %p155, %p156
      %p158 = scmp.ne.s32.totalorder %s150, %s153
      %p159 = scmp.eq.s32.totalorder %s19, 0
      %p160 = por %p158, %p159
      %p161 = scmp.ne.s32.totalorder %s150, %s153
      %p162 = scmp.eq.s32.totalorder %s24, 1
      %p163 = por %p161, %p162
      %p164 = scmp.ne.s32.totalorder %s153, %s154
      %p165 = scmp.eq.s32.totalorder %s24, 0
      %p166 = por %p164, %p165
      %p167 = scmp.ne.s32.totalorder %s153, %s154
      %p168 = scmp.eq.s32.totalorder %s25, 1
      %p169 = por %p167, %p168
      %p171 = scmp.ne.s32.totalorder %s154, %s170
      %p172 = scmp.eq.s32.totalorder %s25, 0
      %p173 = por %p171, %p172
      %p174 = scmp.le.s32.totalorder 1, %s19
      %p175 = scmp.lt.s32.totalorder %s19, 3
      %p176 = pnand %p174, %p175
      %p177 = pneg %p176
      // Predicated region
      $region9: #{tpu_custom_call.1} parent=5 // pred_check
        _
      $region10: #{tpu_custom_call.1} parent=5 // pred_check_branch
        %179 = sbr.rel (%p176) target = $region12
      $region11: #{tpu_custom_call.1} parent=5 // pred_region
        %s180 = ssub.s32 %s19, 1
        // Predicated region
        $region13: #{tpu_custom_call.1} parent=11 // pred_check
          %p181 = pneg %p117
        $region14: #{tpu_custom_call.1} parent=11 // pred_check_branch
          %183 = sbr.rel (%p181) target = $region16
        $region15: #{tpu_custom_call.1} parent=11 // pred_region
          %s185 = ssub.s32 256, 256
          %186 = vsyncadd [#allocation7], %s185
          %s187 = sshll.u32 [#allocation8], 4
          %s188 = int_to_ptr.vmem [resolvable:$true] %s187
          %193 = dma.hbm_to_vmem [thread:$0]  %s2, 256, %s188, [#allocation7], 64, 64, 4
        $region16: #{tpu_custom_call.1} parent=11 // pred_fallthru
          _
        // Predicated region
        $region17: #{tpu_custom_call.1} parent=11 // pred_check
          %p194 = pneg %p138
        $region18: #{tpu_custom_call.1} parent=11 // pred_check_branch
          %196 = sbr.rel (%p194) target = $region20
        $region19: #{tpu_custom_call.1} parent=11 // pred_region
          _
        $region20: #{tpu_custom_call.1} parent=11 // pred_fallthru
          _
      $region12: #{tpu_custom_call.1} parent=5 // pred_fallthru
        _
      %p197 = scmp.lt.s32.totalorder %s19, 2
      // Predicated region
      $region21: #{tpu_custom_call.1} parent=5 // pred_check
        %p198 = pneg %p197
      $region22: #{tpu_custom_call.1} parent=5 // pred_check_branch
        %200 = sbr.rel (%p198) target = $region24
      $region23: #{tpu_custom_call.1} parent=5 // pred_region
        // Predicated region
        $region25: #{tpu_custom_call.1} parent=23 // pred_check
          %p201 = pneg %p60
        $region26: #{tpu_custom_call.1} parent=23 // pred_check_branch
          %203 = sbr.rel (%p201) target = $region28
        $region27: #{tpu_custom_call.1} parent=23 // pred_region
          %s204 = sand.u32 %s50, 1
          %s205 = scalar_lea.sflag [#allocation4], %s204
          %s206 = sand.u32 %s50, 1
          %s207 = smul.addr %s206, 8
          %s208 = scalar_lea.vmem [#allocation3], %s207
          %s209 = smul.u32 2, %s28
          %s211 = ssub.s32 128, 128
          %212 = vsyncadd %s205, %s211
          %s213 = smul.addr %s26, 2
          %s214 = sadd.s32 %s209, %s213
          %s215 = smul.addr %s214, 64
          %s216 = scalar_lea.hbm %s0, %s215
          %s217 = sshll.u32 %s208, 4
          %s218 = int_to_ptr.vmem [resolvable:$true] %s217
          %223 = dma.hbm_to_vmem [thread:$0]  %s216, 128, %s218, %s205, 64, 64, 4
        $region28: #{tpu_custom_call.1} parent=23 // pred_fallthru
          _
        // Predicated region
        $region29: #{tpu_custom_call.1} parent=23 // pred_check
          %p224 = pneg %p90
        $region30: #{tpu_custom_call.1} parent=23 // pred_check_branch
          %226 = sbr.rel (%p224) target = $region32
        $region31: #{tpu_custom_call.1} parent=23 // pred_region
          %s227 = sand.u32 %s19, 1
          %s228 = scalar_lea.sflag [#allocation7], %s227
          %s229 = sand.u32 %s80, 1
          %s230 = smul.addr %s229, 8
          %s231 = scalar_lea.vmem [#allocation6], %s230
          %s232 = smul.u32 2, %s27
          %s234 = ssub.s32 128, 128
          %235 = vsyncadd %s228, %s234
          %s236 = sadd.s32 %s28, %s232
          %s237 = smul.addr %s26, 2
          %s238 = sadd.s32 %s236, %s237
          %s239 = smul.addr %s238, 64
          %s240 = scalar_lea.hbm %s1, %s239
          %s241 = sshll.u32 %s231, 4
          %s242 = int_to_ptr.vmem [resolvable:$true] %s241
          %247 = dma.hbm_to_vmem [thread:$0]  %s240, 128, %s242, %s228, 64, 64, 4
        $region32: #{tpu_custom_call.1} parent=23 // pred_fallthru
          _
      $region24: #{tpu_custom_call.1} parent=5 // pred_fallthru
        _
      %p248 = scmp.le.s32.totalorder 1, %s19
      %p249 = scmp.lt.s32.totalorder %s19, 3
      %p250 = pnand %p248, %p249
      %p251 = pneg %p250
      // Predicated region
      $region33: #{tpu_custom_call.1} parent=5 // pred_check
        _
      $region34: #{tpu_custom_call.1} parent=5 // pred_check_branch
        %253 = sbr.rel (%p250) target = $region36
      $region35: #{tpu_custom_call.1} parent=5 // pred_region
        %s254 = ssub.s32 %s19, 1
        %s255 = sand.u32 %s53, 1
        %s256 = scalar_lea.sflag [#allocation4], %s255
        %s257 = sand.u32 %s53, 1
        %s258 = smul.addr %s257, 8
        %s259 = scalar_lea.vmem [#allocation3], %s258
        // Predicated region
        $region37: #{tpu_custom_call.1} parent=35 // pred_check
          %p260 = pneg %p66
        $region38: #{tpu_custom_call.1} parent=35 // pred_check_branch
          %262 = sbr.rel (%p260) target = $region40
        $region39: #{tpu_custom_call.1} parent=35 // pred_region
          %263 = dma.done %s256, 128
        $region40: #{tpu_custom_call.1} parent=35 // pred_fallthru
          _
        %s264 = sand.u32 %s24, 1
        %s265 = scalar_lea.sflag [#allocation7], %s264
        %s266 = sand.u32 %s83, 1
        %s267 = smul.addr %s266, 8
        %s268 = scalar_lea.vmem [#allocation6], %s267
        // Predicated region
        $region41: #{tpu_custom_call.1} parent=35 // pred_check
          %p269 = pneg %p96
        $region42: #{tpu_custom_call.1} parent=35 // pred_check_branch
          %271 = sbr.rel (%p269) target = $region44
        $region43: #{tpu_custom_call.1} parent=35 // pred_region
          %272 = dma.done %s265, 128
        $region44: #{tpu_custom_call.1} parent=35 // pred_fallthru
          _
        // Predicated region
        $region45: #{tpu_custom_call.1} parent=35 // pred_check
          %p273 = pneg %p117
        $region46: #{tpu_custom_call.1} parent=35 // pred_check_branch
          %275 = sbr.rel (%p273) target = $region48
        $region47: #{tpu_custom_call.1} parent=35 // pred_region
          %276 = dma.done [#allocation7], 256
        $region48: #{tpu_custom_call.1} parent=35 // pred_fallthru
          _
        %s277 = sand.u32 %s53, 1
        %s278 = scalar_lea.sflag [#allocation4], %s277
        %s279 = sand.u32 %s53, 1
        %s280 = smul.addr %s279, 8
        %s281 = scalar_lea.vmem [#allocation3], %s280
        %p282 = pneg %p66
        %p283 = pneg %p63
        %s284 = sand.u32 %s24, 1
        %s285 = scalar_lea.sflag [#allocation7], %s284
        %s286 = sand.u32 %s83, 1
        %s287 = smul.addr %s286, 8
        %s288 = scalar_lea.vmem [#allocation6], %s287
        %p289 = pneg %p96
        %p290 = pneg %p93
        %p291 = pneg %p117
        %p292 = pneg %p114
        %p293 = pneg %p138
        %p294 = pneg %p135
        %p295 = pneg %p166
        %p296 = pneg %p163
        %s297 = sand.u32 %s153, 1
        %s298 = scalar_lea.sflag [#allocation5], %s297
        %s299 = sand.u32 %s153, 1
        %s300 = smul.addr %s299, 16
        %s301 = scalar_lea.vmem [#allocation9], %s300
        %s302 = smul.u32 2, %s31
        %s303 = smul.u32 2, %s30
        %s304 = smul.u32 2, %s30
        %p306 = scmp.eq.s32.totalorder %s31, 0
        // Predicated region
        $region49: #{tpu_custom_call.1} parent=35 // pred_check
          %p307 = pneg %p306
        $region50: #{tpu_custom_call.1} parent=35 // pred_check_branch
          %309 = sbr.rel (%p307) target = $region52
        $region51: #{tpu_custom_call.1} parent=35 // pred_region
          %vm310 = vcmask 523264
          %311 = vst.msk [vmem:[#allocation2] sm:$0xff] %vm310, 0.0
          %312 = vst.msk [vmem:[#allocation2 + $0x8] sm:$0xff] %vm310, 0.0
        $region52: #{tpu_custom_call.1} parent=35 // pred_fallthru
          _
        %v313 = vld [vmem:[%s259] sm:$0xf]
        %v314 = vld [vmem:[%s259 + $0x4] sm:$0xf]
        %v315 = vld [vmem:[#allocation8] sm:$0xf]
        %v316 = vld [vmem:[#allocation8 + $0x4] sm:$0xf]
        %v317 = vld [vmem:[#allocation8 + $0x8] sm:$0xf]
        %v318 = vld [vmem:[#allocation8 + $0xc] sm:$0xf]
        %v321 = vunpack.c.l.b16 %v313
        %v322 = vunpack.c.l.b16 %v314
        %v323 = vpack.c.b16 %v322, %v321
        %v328 = vunpack.c.l.b16 %v315
        %v329 = vunpack.c.l.b16 %v316
        %v330 = vunpack.c.l.b16 %v317
        %v331 = vunpack.c.l.b16 %v318
        %v332 = vpack.c.b16 %v329, %v328
        %v333 = vpack.c.b16 %v331, %v330
        %vm336 = vcmask 261120
        %v338 = vsel %vm336, %v323, 0
        %340 = vmatprep.subr.bf16.mxu0 0
        %341 = vmatpush1.bf16.msra.mxu0 %v332
        %342 = vmatprep.subr.bf16.mxu0 0
        %343 = vmatpush1.bf16.msra.mxu0 %v333
        %344 = vmatprep.subr.bf16.mxu0 0
        %345 = vmatpush1.bf16.msra.mxu0 0
        %346 = vmatprep.subr.bf16.mxu0 0
        %347 = vmatpush1.bf16.msra.mxu0 0
        %348 = vmatprep.subr.bf16.mxu0 0
        %349 = vmatpush1.bf16.msra.mxu0 0
        %350 = vmatprep.subr.bf16.mxu0 0
        %351 = vmatpush1.bf16.msra.mxu0 0
        %352 = vmatprep.subr.bf16.mxu0 0
        %353 = vmatpush1.bf16.msra.mxu0 0
        %354 = vmatprep.subr.bf16.mxu0 0
        %355 = vmatpush1.bf16.msra.mxu0 0
        %356 = vmatprep.subr.bf16.mxu0 0
        %357 = vmatpush1.bf16.msra.mxu0 0
        %358 = vmatprep.subr.bf16.mxu0 0
        %359 = vmatpush1.bf16.msra.mxu0 0
        %360 = vmatprep.subr.bf16.mxu0 0
        %361 = vmatpush1.bf16.msra.mxu0 0
        %362 = vmatprep.subr.bf16.mxu0 0
        %363 = vmatpush1.bf16.msra.mxu0 0
        %364 = vmatprep.subr.bf16.mxu0 0
        %365 = vmatpush1.bf16.msra.mxu0 0
        %366 = vmatprep.subr.bf16.mxu0 0
        %367 = vmatpush1.bf16.msra.mxu0 0
        %368 = vmatprep.subr.bf16.mxu0 0
        %369 = vmatpush1.bf16.msra.mxu0 0
        %370 = vmatprep.subr.bf16.mxu0 0
        %371 = vmatpush1.bf16.msra.mxu0 0
        %372 = vmatprep.mubr.bf16.mxu0 0
        %373 = vmatmul.mubr.bf16.gmra.mrb[0].mxu0 %v338
        %v374 = vpop.f32.mrb[0].mxu0
        %v375 = vadd.f32 0.0, %v374
        %v376 = vpop.f32.mrb[0].mxu0
        %v377 = vpop.f32.mrb[0].mxu0
        %v378 = vadd.f32 0.0, %v377
        %v379 = vpop.f32.mrb[0].mxu0
        %380 = vdwg.mxu0
        %v381 = vpack.c.bf16 %v378, %v375
        %v382 = vld [vmem:[%s268] sm:$0xf]
        %v383 = vld [vmem:[%s268 + $0x4] sm:$0xf]
        %v384 = vld [vmem:[#allocation2] sm:$0xff]
        %v385 = vld [vmem:[#allocation2 + $0x8] sm:$0xff]
        %v388 = vunpack.c.l.b16 %v382
        %v389 = vunpack.c.l.b16 %v383
        %v390 = vpack.c.b16 %v389, %v388
        %vm391 = vcmask 130048
        %v393 = vsel %vm391, %v390, 0
        %395 = vmatprep.subr.bf16.mxu0 0
        %396 = vmatpush1.bf16.msra.mxu0 %v381
        %397 = vmatprep.subr.bf16.mxu0 0
        %398 = vmatpush1.bf16.msra.mxu0 0
        %399 = vmatprep.subr.bf16.mxu0 0
        %400 = vmatpush1.bf16.msra.mxu0 0
        %401 = vmatprep.subr.bf16.mxu0 0
        %402 = vmatpush1.bf16.msra.mxu0 0
        %403 = vmatprep.subr.bf16.mxu0 0
        %404 = vmatpush1.bf16.msra.mxu0 0
        %405 = vmatprep.subr.bf16.mxu0 0
        %406 = vmatpush1.bf16.msra.mxu0 0
        %407 = vmatprep.subr.bf16.mxu0 0
        %408 = vmatpush1.bf16.msra.mxu0 0
        %409 = vmatprep.subr.bf16.mxu0 0
        %410 = vmatpush1.bf16.msra.mxu0 0
        %411 = vmatprep.subr.bf16.mxu0 0
        %412 = vmatpush1.bf16.msra.mxu0 0
        %413 = vmatprep.subr.bf16.mxu0 0
        %414 = vmatpush1.bf16.msra.mxu0 0
        %415 = vmatprep.subr.bf16.mxu0 0
        %416 = vmatpush1.bf16.msra.mxu0 0
        %417 = vmatprep.subr.bf16.mxu0 0
        %418 = vmatpush1.bf16.msra.mxu0 0
        %419 = vmatprep.subr.bf16.mxu0 0
        %420 = vmatpush1.bf16.msra.mxu0 0
        %421 = vmatprep.subr.bf16.mxu0 0
        %422 = vmatpush1.bf16.msra.mxu0 0
        %423 = vmatprep.subr.bf16.mxu0 0
        %424 = vmatpush1.bf16.msra.mxu0 0
        %425 = vmatprep.subr.bf16.mxu0 0
        %426 = vmatpush1.bf16.msra.mxu0 0
        %427 = vmatprep.mubr.bf16.mxu0 0
        %428 = vmatmul.mubr.bf16.gmra.mrb[0].mxu0 %v393
        %v429 = vpop.f32.mrb[0].mxu0
        %v430 = vadd.f32 0.0, %v429
        %v431 = vpop.f32.mrb[0].mxu0
        %v432 = vpop.f32.mrb[0].mxu0
        %v433 = vadd.f32 0.0, %v432
        %v434 = vpop.f32.mrb[0].mxu0
        %435 = vdwg.mxu0
        %v436 = vadd.f32 %v384, %v430
        %v437 = vadd.f32 %v385, %v433
        %vm438 = vcmask 523264
        %439 = vst.msk [vmem:[#allocation2] sm:$0xff] %vm438, %v436
        %440 = vst.msk [vmem:[#allocation2 + $0x8] sm:$0xff] %vm438, %v437
        // Predicated region
        $region53: #{tpu_custom_call.1} parent=35 // pred_check
          %p441 = pneg %p306
        $region54: #{tpu_custom_call.1} parent=35 // pred_check_branch
          %443 = sbr.rel (%p441) target = $region56
        $region55: #{tpu_custom_call.1} parent=35 // pred_region
          %v444 = vld [vmem:[#allocation2] sm:$0xff]
          %v445 = vld [vmem:[#allocation2 + $0x8] sm:$0xff]
          %446 = vst.msk [vmem:[%s301] sm:$0xff] %vm438, %v444
          %447 = vst.msk [vmem:[%s301 + $0x8] sm:$0xff] %vm438, %v445
        $region56: #{tpu_custom_call.1} parent=35 // pred_fallthru
          _
        %s448 = sand.u32 %s153, 1
        %s449 = scalar_lea.sflag [#allocation5], %s448
        %s450 = sand.u32 %s153, 1
        %s451 = smul.addr %s450, 16
        %s452 = scalar_lea.vmem [#allocation9], %s451
        // Predicated region
        $region57: #{tpu_custom_call.1} parent=35 // pred_check
          %p453 = pneg %p163
        $region58: #{tpu_custom_call.1} parent=35 // pred_check_branch
          %455 = sbr.rel (%p453) target = $region60
        $region59: #{tpu_custom_call.1} parent=35 // pred_region
          %s456 = smul.u32 2, %s30
          %s458 = ssub.s32 256, 256
          %459 = vsyncadd %s449, %s458
          %s460 = smul.addr %s29, 2
          %s461 = sadd.s32 %s456, %s460
          %s462 = smul.addr %s461, 128
          %s463 = scalar_lea.hbm %s4, %s462
          %s464 = sshll.u32 %s452, 4
          %s465 = int_to_ptr.vmem [resolvable:$true] %s464
          %470 = dma.vmem_to_hbm [thread:$0]  %s465, 256, %s463, %s449, 128, 128, 8
        $region60: #{tpu_custom_call.1} parent=35 // pred_fallthru
          _
      $region36: #{tpu_custom_call.1} parent=5 // pred_fallthru
        _
      %p471 = scmp.le.s32.totalorder 2, %s19
      // Predicated region
      $region61: #{tpu_custom_call.1} parent=5 // pred_check
        %p472 = pneg %p471
      $region62: #{tpu_custom_call.1} parent=5 // pred_check_branch
        %474 = sbr.rel (%p472) target = $region64
      $region63: #{tpu_custom_call.1} parent=5 // pred_region
        %s475 = ssub.s32 %s19, 2
        // Predicated region
        $region65: #{tpu_custom_call.1} parent=63 // pred_check
          %p476 = pneg %p169
        $region66: #{tpu_custom_call.1} parent=63 // pred_check_branch
          %478 = sbr.rel (%p476) target = $region68
        $region67: #{tpu_custom_call.1} parent=63 // pred_region
          %s479 = sand.u32 %s154, 1
          %s480 = scalar_lea.sflag [#allocation5], %s479
          %s481 = sand.u32 %s154, 1
          %s482 = smul.addr %s481, 16
          %s483 = scalar_lea.vmem [#allocation9], %s482
          %484 = dma.done %s480, 256
        $region68: #{tpu_custom_call.1} parent=63 // pred_fallthru
          _
      $region64: #{tpu_custom_call.1} parent=5 // pred_fallthru
        _
    $region6: #{tpu_custom_call.1} parent=1 // loop_footer
      %s23 = sadd.s32 1, %s19
    $region7: #{tpu_custom_call.1} parent=1 // loop_footer_branch
      %18 = sbr.rel target = $region3
    $region8: #{tpu_custom_call.1} parent=1 // loop_exit
      _
    %485 = vsyncpa [#allocation4], 1
    %s486 = scalar_lea.sflag [#allocation4], 1
    %487 = vsyncpa %s486, 1
    %488 = vsyncpa [#allocation7], 1
    %s489 = scalar_lea.sflag [#allocation7], 1
    %490 = vsyncpa %s489, 1
    %491 = vsyncpa [#allocation5], 1
    %s492 = scalar_lea.sflag [#allocation5], 1
    %493 = vsyncpa %s492, 1

</llo_original>
